<compile_context>
chip_gen: v7x
topology: tpu7x:2x2x1
jax: 0.10.0
libtpu: 0.0.40
codegen_flags: <defaults>
</compile_context>

<pallas_src>
import jax
import jax.numpy as jnp
from jax.experimental import pallas as pl
from jax.experimental.pallas import tpu as pltpu


# ---------------------------------------------------------------------------
# Pallas kernel
# ---------------------------------------------------------------------------
def _sphere_sdf_kernel(radius_ref, x_ref, o_ref):
    """o = ||x||_2 - radius over the sublane (size-3) axis of a (3, TN) block."""
    r = radius_ref[0]                                  # SMEM f32 scalar
    x = x_ref[...].astype(jnp.float32)                 # (3, TN), lane-dense
    x0 = x[0:1, :]
    x1 = x[1:2, :]
    x2 = x[2:3, :]
    sq = x0 * x0 + x1 * x1 + x2 * x2                   # (1, TN), pure VPU
    o_ref[...] = (jnp.sqrt(sq) - r).astype(o_ref.dtype)


# ---------------------------------------------------------------------------
# Wrapper
# ---------------------------------------------------------------------------
def _choose_point_tile(m, max_tile=65536):
    """Lane tile: multiple of 128, large (amortize ~0.35us/step), but leaving
    >=2 grid blocks when m allows so v7x can shard across its 2 TensorCores.
    Padded VMEM footprint is ~32*TN B/buffer -> 8 MiB total at TN=64K (fits
    the scoped-VMEM default on v5e/v6e/v7x)."""
    half = (m // 2) // 128 * 128
    return int(min(max_tile, max(128, half)))


def sphere_template_forward(points, radius=0.5):
    """points: (B, N, 3) -> sdfs: (B, N, 1), matching SphereTemplate.forward."""
    B, N, D = points.shape
    assert D == 3, "SphereTemplate.forward expects last dim == 3"
    M = B * N
    dtype = points.dtype

    TN = _choose_point_tile(M)
    G = pl.cdiv(M, TN)
    M_pad = G * TN

    # Channel-major, lane-dense presentation: (B, N, 3) -> (3, B*N) [+ pad].
    pts_t = jnp.transpose(points.reshape(M, 3), (1, 0))          # (3, M)
    if M_pad != M:
        pts_t = jnp.pad(pts_t, ((0, 0), (0, M_pad - M)))          # (3, M_pad)

    radius_arr = jnp.asarray(radius, dtype=jnp.float32).reshape((1,))

    out = pl.pallas_call(
        _sphere_sdf_kernel,
        out_shape=jax.ShapeDtypeStruct((1, M_pad), dtype),
        grid=(G,),
        in_specs=[
            pl.BlockSpec(memory_space=pltpu.MemorySpace.SMEM),    # radius scalar
            pl.BlockSpec((3, TN), lambda i: (0, i)),              # points (3, TN)
        ],
        out_specs=pl.BlockSpec((1, TN), lambda i: (0, i)),        # dense (1, TN)
        compiler_params=pltpu.CompilerParams(
            dimension_semantics=("parallel",)),
    )(radius_arr, pts_t)

    # (1, M_pad) -> (M,) -> (B, N, 1); reshapes/slice are cheap wrapper plumbing.
    return out.reshape(M_pad)[:M].reshape(B, N, 1)


# Pure-JAX reference (for correctness checking only).
def _sphere_template_forward_ref(points, radius=0.5):
    return jnp.linalg.norm(points, axis=-1, keepdims=True) - radius


# ---------------------------------------------------------------------------
# Main
# ---------------------------------------------------------------------------
if __name__ == "__main__":
    key = jax.random.PRNGKey(0)
    B, N = 2, 64
    radius = 0.5

    # Points roughly around the sphere (like get_random_points would produce,
    # plus some radial noise so the SDF is non-trivial).
    k1, k2 = jax.random.split(key)
    rnd = jax.random.normal(k1, (B, N, 3), jnp.float32)
    unit = rnd / jnp.linalg.norm(rnd, axis=-1, keepdims=True)
    scale = 1.0 + 0.3 * jax.random.normal(k2, (B, N, 1), jnp.float32)
    points = unit * radius * scale                                # (B, N, 3)

    # radius is a runtime (SMEM) argument: changing it does not recompile.
    fwd = jax.jit(sphere_template_forward)
    sdfs = fwd(points, radius)
    jax.block_until_ready(sdfs)

    assert sdfs.shape == (B, N, 1)
    ref = _sphere_template_forward_ref(points, radius)
    assert bool(jnp.all(jnp.isfinite(sdfs)))
    assert bool(jnp.allclose(sdfs, ref, atol=1e-5, rtol=1e-5))
    print("KERNEL_OK")
</pallas_src>

<mosaic_0001>
module attributes {stable_mosaic.version = 11 : i64} {
  func.func @_sphere_sdf_kernel(%arg0: i32, %arg1: memref<1xf32, #tpu.memory_space<smem>>, %arg2: memref<3x128xf32, #tpu.memory_space<vmem>>, %arg3: memref<1x128xf32, #tpu.memory_space<vmem>>) attributes {dimension_semantics = [#tpu.dimension_semantics<parallel>], iteration_bounds = array<i64: 1>, scalar_prefetch = 0 : i64, scratch_operands = 0 : i64, tpu.core_type = #tpu.core_type<tc>, window_params = [{transform_indices = @transform_0, window_bounds = array<i64: 1>}, {transform_indices = @transform_1, window_bounds = array<i64: 3, 128>}, {transform_indices = @transform_2, window_bounds = array<i64: 1, 128>}]} {
    %c0 = arith.constant 0 : index
    %0 = memref.load %arg1[%c0] : memref<1xf32, #tpu.memory_space<smem>>
    %c0_0 = arith.constant 0 : index
    %c0_1 = arith.constant 0 : index
    %1 = vector.load %arg2[%c0_0, %c0_1] : memref<3x128xf32, #tpu.memory_space<vmem>>, vector<3x128xf32>
    %2 = vector.extract_strided_slice %1 {offsets = [0, 0], sizes = [1, 128], strides = [1, 1]} : vector<3x128xf32> to vector<1x128xf32>
    %3 = vector.extract_strided_slice %1 {offsets = [1, 0], sizes = [1, 128], strides = [1, 1]} : vector<3x128xf32> to vector<1x128xf32>
    %4 = vector.extract_strided_slice %1 {offsets = [2, 0], sizes = [1, 128], strides = [1, 1]} : vector<3x128xf32> to vector<1x128xf32>
    %5 = arith.mulf %2, %2 : vector<1x128xf32>
    %6 = arith.mulf %3, %3 : vector<1x128xf32>
    %7 = arith.addf %5, %6 : vector<1x128xf32>
    %8 = arith.mulf %4, %4 : vector<1x128xf32>
    %9 = arith.addf %7, %8 : vector<1x128xf32>
    %10 = math.sqrt %9 : vector<1x128xf32>
    %11 = vector.broadcast %0 : f32 to vector<1x128xf32>
    %12 = arith.subf %10, %11 : vector<1x128xf32>
    %c0_2 = arith.constant 0 : index
    %c0_3 = arith.constant 0 : index
    %13 = vector.load %arg3[%c0_2, %c0_3] : memref<1x128xf32, #tpu.memory_space<vmem>>, vector<1x128xf32>
    tpu.vector_store %arg3[%c0_2, %c0_3], %12 {strides = array<i32>} : memref<1x128xf32, #tpu.memory_space<vmem>>, vector<1x128xf32>,
    return
  }
  func.func @transform_0(%arg0: i32) -> i32 {
    %c0_i32 = arith.constant 0 : i32
    %c0_i32_0 = arith.constant 0 : i32
    return %c0_i32 : i32
  }
  func.func @transform_1(%arg0: i32) -> (i32, i32) {
    %c0_i32 = arith.constant 0 : i32
    %c0_i32_0 = arith.constant 0 : i32
    return %c0_i32, %arg0 : i32, i32
  }
  func.func @transform_2(%arg0: i32) -> (i32, i32) {
    %c0_i32 = arith.constant 0 : i32
    %c0_i32_0 = arith.constant 0 : i32
    return %c0_i32, %arg0 : i32, i32
  }
}

</mosaic_0001>

<llo_original>
// kernel: sphere_template_forward.1
$region0: #{sphere_template_forward.1}
  #allocation0 [shape = 'u32[]', space=smem, size = 0x4, offset = 0x4, fixed_abs, tag = 'smem constant byte address 0x4 - core index']
  #allocation1 [shape = 'u32[144,128]{1,0:T(1,128)}', space=vmem, size = 0x12000, scoped, tag = 'internal scratch']
  #allocation2 [shape = 'f32[1]{0:T(128)S(6)}', space=smem, size = 0x200, scoped, tag = 'scoped memory for sphere_template_forward.1']
  %s0 = inlined_call_operand.<no memory space> [shape: f32[1], index: 0, kind: input, shape index: {}]
  %s1 = inlined_call_operand.vmem [shape: f32[3,128], index: 1, kind: input, shape index: {}]
  %s2 = inlined_call_operand.vmem [shape: f32[1,128], index: 2, kind: output, shape index: {}]
  %s3 = sld [smem:[#allocation0]]
  $region18: #{sphere_template_forward.1} parent=0
    _
  %s5 = ssub.s32 1, %s3
  %s6 = scalar_select 0, %s5, %s3
  %7 = sst [smem:[#allocation2]] %s0
  // Predicated region
  $region2: #{sphere_template_forward.1} parent=0 // pred_check
    _
  $region3: #{sphere_template_forward.1} parent=0 // pred_check_branch
    %9 = sbr.rel (0) target = $region5
  $region4: #{sphere_template_forward.1} parent=0 // pred_region
    _
  $region5: #{sphere_template_forward.1} parent=0 // pred_fallthru
    _
  // Predicated region
  $region6: #{sphere_template_forward.1} parent=0 // pred_check
    _
  $region7: #{sphere_template_forward.1} parent=0 // pred_check_branch
    %11 = sbr.rel (0) target = $region9
  $region8: #{sphere_template_forward.1} parent=0 // pred_region
    _
  $region9: #{sphere_template_forward.1} parent=0 // pred_fallthru
    _
  %s12 = sld [smem:[#allocation2]]
  %v13 = vld [vmem:[%s1] sm:$0x7]
  %v14 = vmul.f32 %v13, %v13
  %v16 = vrot.slane %v14, 1
  %v18 = vadd.f32 %v14, %v16
  %v19 = vrot.slane %v14, 2
  %v21 = vadd.f32 %v18, %v19
  %v22 = vrsqrt.pop %v21
  %v23 = vmul.f32 %v21, %v22
  %vm24 = vcmp.eq.f32.partialorder %v21, inf
  %v25 = vsel %vm24, %v21, %v23
  %vm26 = vcmp.eq.f32.partialorder %v21, 0.0
  %v27 = vand.u32 %v21, 2147483648
  %v28 = vsel %vm26, %v27, %v25
  %v29 = vstv %s12
  %v30 = vsub.f32 %v28, %v29
  %31 = vst [vmem:[%s2] sm:$0x1] %v30
  // Predicated region
  $region10: #{sphere_template_forward.1} parent=0 // pred_check
    _
  $region11: #{sphere_template_forward.1} parent=0 // pred_check_branch
    %33 = sbr.rel (0) target = $region13
  $region12: #{sphere_template_forward.1} parent=0 // pred_region
    _
  $region13: #{sphere_template_forward.1} parent=0 // pred_fallthru
    _
  // Predicated region
  $region14: #{sphere_template_forward.1} parent=0 // pred_check
    _
  $region15: #{sphere_template_forward.1} parent=0 // pred_check_branch
    %35 = sbr.rel (0) target = $region17
  $region16: #{sphere_template_forward.1} parent=0 // pred_region
    _
  $region17: #{sphere_template_forward.1} parent=0 // pred_fallthru
    _

</llo_original>
